<compile_context>
chip_gen: v5e
topology: v5e:2x2
jax: 0.10.0
libtpu: 0.0.40
codegen_flags: <defaults>
</compile_context>

<pallas_src>
import functools

import jax
import jax.numpy as jnp
from jax.experimental import pallas as pl
from jax.experimental.pallas import tpu as pltpu


def _calibration_kernel(p_ref, o_ref, *, ratio: float):
    # Elementwise: o = p*r / (1 - p + r*p) == (r*p) / (1 + (r-1)*p)
    r = jnp.float32(ratio)
    rm1 = jnp.float32(ratio - 1.0)        # folded at trace time
    p = p_ref[...].astype(jnp.float32)    # compute in f32 regardless of input dtype
    o_ref[...] = ((r * p) / (1.0 + rm1 * p)).astype(o_ref.dtype)


def numeric_calibration(probs: jax.Array, ratio: float,
                        *, tm: int = 512, tn: int = 2048) -> jax.Array:
    """Elementwise calibration: probs * ratio / (1 - probs + ratio * probs).

    Accepts any-rank `probs`; it is flattened to 2-D (rows, last-dim) since the
    op is purely elementwise, then tiled with large lane-dense blocks.
    """
    orig_shape = probs.shape
    if probs.ndim == 0:
        probs2 = probs.reshape(1, 1)
    elif probs.ndim == 1:
        probs2 = probs.reshape(1, -1)
    else:
        probs2 = probs.reshape(-1, probs.shape[-1])

    R, C = probs2.shape

    # Block shape: clamp to array dims; if smaller than the full dim it must
    # respect the sublane/lane tiling (sublane multiple depends on dtype width).
    itemsize = jnp.dtype(probs2.dtype).itemsize
    sub = {4: 8, 2: 16, 1: 32}.get(itemsize, 8)

    bm = min(tm, R)
    if bm != R and bm % sub != 0:
        bm = (bm // sub) * sub or R
    bn = min(tn, C)
    if bn != C and bn % 128 != 0:
        bn = (bn // 128) * 128 or C

    grid = (pl.cdiv(R, bm), pl.cdiv(C, bn))
    kernel = functools.partial(_calibration_kernel, ratio=float(ratio))

    out2 = pl.pallas_call(
        kernel,
        out_shape=jax.ShapeDtypeStruct((R, C), probs2.dtype),
        grid=grid,
        in_specs=[pl.BlockSpec((bm, bn), lambda i, j: (i, j))],
        out_specs=pl.BlockSpec((bm, bn), lambda i, j: (i, j)),
        compiler_params=pltpu.CompilerParams(
            dimension_semantics=("parallel", "parallel")),
    )(probs2)

    return out2.reshape(orig_shape)


if __name__ == "__main__":
    # Deterministic synthetic setup (no checkpoint load).
    pos_downsampling_rate = 1.0
    neg_downsampling_rate = 0.03
    ratio = neg_downsampling_rate / pos_downsampling_rate

    key = jax.random.PRNGKey(0)
    # Small probability tensor: 16 rows x 256 cols, values in (0, 1).
    probs = jax.random.uniform(key, (16, 256), dtype=jnp.float32,
                               minval=1e-4, maxval=1.0 - 1e-4)

    out = numeric_calibration(probs, ratio)
    out = jax.block_until_ready(out)

    # Reference check in plain JAX (same math as the PyTorch forward).
    ref = probs * ratio / (1.0 - probs + ratio * probs)
    assert jnp.allclose(out, ref, rtol=1e-5, atol=1e-6), "f32 mismatch vs reference"

    # bf16 path: kernel upcasts to f32 internally and casts the result back.
    probs_bf16 = probs.astype(jnp.bfloat16)
    out_bf16 = jax.block_until_ready(numeric_calibration(probs_bf16, ratio))
    p32 = probs_bf16.astype(jnp.float32)
    ref_bf16 = (p32 * ratio / (1.0 - p32 + ratio * p32)).astype(jnp.bfloat16)
    assert jnp.allclose(out_bf16.astype(jnp.float32), ref_bf16.astype(jnp.float32),
                        rtol=2e-2, atol=2e-2), "bf16 mismatch vs reference"

    print("KERNEL_OK")
</pallas_src>

<mosaic_0001>
module attributes {stable_mosaic.version = 11 : i64} {
  func.func @_calibration_kernel(%arg0: i32, %arg1: i32, %arg2: memref<16x256xf32, #tpu.memory_space<vmem>>, %arg3: memref<16x256xf32, #tpu.memory_space<vmem>>) attributes {dimension_semantics = [#tpu.dimension_semantics<parallel>, #tpu.dimension_semantics<parallel>], iteration_bounds = array<i64: 1, 1>, scalar_prefetch = 0 : i64, scratch_operands = 0 : i64, tpu.core_type = #tpu.core_type<tc>, window_params = [{transform_indices = @transform_0, window_bounds = array<i64: 16, 256>}, {transform_indices = @transform_1, window_bounds = array<i64: 16, 256>}]} {
    %c0 = arith.constant 0 : index
    %c0_0 = arith.constant 0 : index
    %0 = vector.load %arg2[%c0, %c0_0] : memref<16x256xf32, #tpu.memory_space<vmem>>, vector<16x256xf32>
    %cst = arith.constant 3.000000e-02 : f32
    %1 = vector.broadcast %cst : f32 to vector<16x256xf32>
    %2 = arith.mulf %1, %0 : vector<16x256xf32>
    %cst_1 = arith.constant -9.700000e-01 : f32
    %3 = vector.broadcast %cst_1 : f32 to vector<16x256xf32>
    %4 = arith.mulf %3, %0 : vector<16x256xf32>
    %cst_2 = arith.constant 1.000000e+00 : f32
    %5 = vector.broadcast %cst_2 : f32 to vector<16x256xf32>
    %6 = arith.addf %5, %4 : vector<16x256xf32>
    %7 = arith.divf %2, %6 : vector<16x256xf32>
    %c0_3 = arith.constant 0 : index
    %c0_4 = arith.constant 0 : index
    %8 = vector.load %arg3[%c0_3, %c0_4] : memref<16x256xf32, #tpu.memory_space<vmem>>, vector<16x256xf32>
    tpu.vector_store %arg3[%c0_3, %c0_4], %7 {strides = array<i32>} : memref<16x256xf32, #tpu.memory_space<vmem>>, vector<16x256xf32>,
    return
  }
  func.func @transform_0(%arg0: i32, %arg1: i32) -> (i32, i32) {
    %c0_i32 = arith.constant 0 : i32
    return %arg0, %arg1 : i32, i32
  }
  func.func @transform_1(%arg0: i32, %arg1: i32) -> (i32, i32) {
    %c0_i32 = arith.constant 0 : i32
    return %arg0, %arg1 : i32, i32
  }
}

</mosaic_0001>

<llo_original>
// kernel: tpu_custom_call.1
$region0: #{tpu_custom_call.1}
  #allocation0 [shape = 'u32[]', space=smem, size = 0x4, offset = 0x4, fixed_abs, tag = 'smem constant byte address 0x4 - core index']
  #allocation1 [shape = 'u32[72,128]{1,0:T(1,128)}', space=vmem, size = 0x9000, scoped, tag = 'internal scratch']
  %s0 = inlined_call_operand.hbm [shape: f32[16,256], index: 0, kind: input, shape index: {}]
  %s1 = inlined_call_operand.hbm [shape: f32[16,256], index: 1, kind: output, shape index: {}]
  %s2 = sld [smem:[#allocation0]]
  $region18: #{tpu_custom_call.1} parent=0
    _
  %s4 = ssub.s32 1, %s2
  %s5 = scalar_select 0, %s4, %s2
  $region1: #{tpu_custom_call.1} parent=0
    #allocation2 [shape = 'u8[16384]{0}', space=vmem, size = 0x4000, scoped, tag = 'input window, operand 0, single buffered']
    #allocation3 [shape = 's32[1]{0}', space=sflag, size = 0x4, scoped, tag = 'scoped memory for tpu_custom_call.1']
    #allocation4 [shape = 's32[1]{0}', space=sflag, size = 0x4, scoped, tag = 'scoped memory for tpu_custom_call.1']
    #allocation5 [shape = 'u8[16384]{0}', space=vmem, size = 0x4000, scoped, tag = 'output window, operand 0, single buffered']
    %6 = vsyncpa [#allocation3], 0
    %7 = vsyncpa [#allocation4], 0
    // Predicated region
    $region2: #{tpu_custom_call.1} parent=1 // pred_check
      _
    $region3: #{tpu_custom_call.1} parent=1 // pred_check_branch
      %9 = sbr.rel (0) target = $region5
    $region4: #{tpu_custom_call.1} parent=1 // pred_region
      %11 = vsyncadd [#allocation3], 0
      %s12 = sshll.u32 %s0, 4
      %s13 = int_to_ptr.hbm [resolvable:$true] %s12
      %s14 = sshll.u32 [#allocation2], 4
      %s15 = int_to_ptr.vmem [resolvable:$true] %s14
      %20 = dma.hbm_to_vmem [thread:$0]  %s13, 512, %s15, [#allocation3], 256, 256, 16
    $region5: #{tpu_custom_call.1} parent=1 // pred_fallthru
      _
    // Predicated region
    $region6: #{tpu_custom_call.1} parent=1 // pred_check
      _
    $region7: #{tpu_custom_call.1} parent=1 // pred_check_branch
      %22 = sbr.rel (0) target = $region9
    $region8: #{tpu_custom_call.1} parent=1 // pred_region
      %24 = dma.done [#allocation3], 512
    $region9: #{tpu_custom_call.1} parent=1 // pred_fallthru
      _
    %v25 = vld [vmem:[#allocation2] sm:$0xff]
    %v26 = vld [vmem:[#allocation2 + $0x8] sm:$0xff]
    %v27 = vld [vmem:[#allocation2 + $0x10] sm:$0xff]
    %v28 = vld [vmem:[#allocation2 + $0x18] sm:$0xff]
    %v29 = vmul.f32 %v25, 0.03
    %v30 = vmul.f32 %v26, 0.03
    %v31 = vmul.f32 %v27, 0.03
    %v32 = vmul.f32 %v28, 0.03
    %v33 = vmul.f32 %v25, -0.97
    %v34 = vmul.f32 %v26, -0.97
    %v35 = vmul.f32 %v27, -0.97
    %v36 = vmul.f32 %v28, -0.97
    %v37 = vadd.f32 %v33, 1.0
    %v38 = vadd.f32 %v34, 1.0
    %v39 = vadd.f32 %v35, 1.0
    %v40 = vadd.f32 %v36, 1.0
    %v41 = vrcp.pop %v37
    %v42 = vmul.f32 %v37, %v41
    %v43 = vsub.f32 1.0, %v42
    %v44 = vmul.f32 %v41, %v43
    %v45 = vadd.f32 %v41, %v44
    %vm46 = vweird.f32 %v37
    %vm47 = vweird.f32 %v41
    %vm48 = vmor %vm46, %vm47
    %v49 = vsel %vm48, %v41, %v45
    %v50 = vand.u32 2147483647, %v37
    %vm51 = vcmp.eq.f32.partialorder %v50, 8.507059e+37
    %v52 = vand.u32 %v37, 2147483648
    %v53 = vor.u32 1.1754944e-38, %v52
    %v54 = vsel %vm51, %v53, %v49
    %v55 = vmul.f32 %v29, %v54
    %v56 = vrcp.pop %v38
    %v57 = vmul.f32 %v38, %v56
    %v58 = vsub.f32 1.0, %v57
    %v59 = vmul.f32 %v56, %v58
    %v60 = vadd.f32 %v56, %v59
    %vm61 = vweird.f32 %v38
    %vm62 = vweird.f32 %v56
    %vm63 = vmor %vm61, %vm62
    %v64 = vsel %vm63, %v56, %v60
    %v65 = vand.u32 2147483647, %v38
    %vm66 = vcmp.eq.f32.partialorder %v65, 8.507059e+37
    %v67 = vand.u32 %v38, 2147483648
    %v68 = vor.u32 1.1754944e-38, %v67
    %v69 = vsel %vm66, %v68, %v64
    %v70 = vmul.f32 %v30, %v69
    %v71 = vrcp.pop %v39
    %v72 = vmul.f32 %v39, %v71
    %v73 = vsub.f32 1.0, %v72
    %v74 = vmul.f32 %v71, %v73
    %v75 = vadd.f32 %v71, %v74
    %vm76 = vweird.f32 %v39
    %vm77 = vweird.f32 %v71
    %vm78 = vmor %vm76, %vm77
    %v79 = vsel %vm78, %v71, %v75
    %v80 = vand.u32 2147483647, %v39
    %vm81 = vcmp.eq.f32.partialorder %v80, 8.507059e+37
    %v82 = vand.u32 %v39, 2147483648
    %v83 = vor.u32 1.1754944e-38, %v82
    %v84 = vsel %vm81, %v83, %v79
    %v85 = vmul.f32 %v31, %v84
    %v86 = vrcp.pop %v40
    %v87 = vmul.f32 %v40, %v86
    %v88 = vsub.f32 1.0, %v87
    %v89 = vmul.f32 %v86, %v88
    %v90 = vadd.f32 %v86, %v89
    %vm91 = vweird.f32 %v40
    %vm92 = vweird.f32 %v86
    %vm93 = vmor %vm91, %vm92
    %v94 = vsel %vm93, %v86, %v90
    %v95 = vand.u32 2147483647, %v40
    %vm96 = vcmp.eq.f32.partialorder %v95, 8.507059e+37
    %v97 = vand.u32 %v40, 2147483648
    %v98 = vor.u32 1.1754944e-38, %v97
    %v99 = vsel %vm96, %v98, %v94
    %v100 = vmul.f32 %v32, %v99
    %101 = vst [vmem:[#allocation5] sm:$0xff] %v55
    %102 = vst [vmem:[#allocation5 + $0x8] sm:$0xff] %v70
    %103 = vst [vmem:[#allocation5 + $0x10] sm:$0xff] %v85
    %104 = vst [vmem:[#allocation5 + $0x18] sm:$0xff] %v100
    // Predicated region
    $region10: #{tpu_custom_call.1} parent=1 // pred_check
      _
    $region11: #{tpu_custom_call.1} parent=1 // pred_check_branch
      %106 = sbr.rel (0) target = $region13
    $region12: #{tpu_custom_call.1} parent=1 // pred_region
      %108 = vsyncadd [#allocation4], 0
      %s109 = sshll.u32 [#allocation5], 4
      %s110 = int_to_ptr.vmem [resolvable:$true] %s109
      %s111 = sshll.u32 %s1, 4
      %s112 = int_to_ptr.hbm [resolvable:$true] %s111
      %117 = dma.vmem_to_hbm [thread:$0]  %s110, 512, %s112, [#allocation4], 256, 256, 16
    $region13: #{tpu_custom_call.1} parent=1 // pred_fallthru
      _
    // Predicated region
    $region14: #{tpu_custom_call.1} parent=1 // pred_check
      _
    $region15: #{tpu_custom_call.1} parent=1 // pred_check_branch
      %119 = sbr.rel (0) target = $region17
    $region16: #{tpu_custom_call.1} parent=1 // pred_region
      %121 = dma.done [#allocation4], 512
    $region17: #{tpu_custom_call.1} parent=1 // pred_fallthru
      _
    %122 = vsyncpa [#allocation3], 1
    %123 = vsyncpa [#allocation4], 1

</llo_original>
